<compile_context>
chip_gen: v6e
topology: v6e:2x2x1
jax: 0.10.0
libtpu: 0.0.40
codegen_flags: <defaults>
</compile_context>

<pallas_src>
import functools

import jax
import jax.numpy as jnp
from jax.experimental import pallas as pl
from jax.experimental.pallas import tpu as pltpu

_LANES = 128  # lane width of the partial-sum output slab


def _triplet_partial_kernel(a_ref, p_ref, n_ref, o_ref, *,
                            margin, batch, tile_b, needs_mask):
    a = a_ref[...].astype(jnp.float32)
    p = p_ref[...].astype(jnp.float32)
    n = n_ref[...].astype(jnp.float32)

    # calc_euclidean: (x1 - x2).pow(2).sum(1); kept 2D for clean vreg layout.
    dpos = a - p
    dneg = a - n
    dist_pos = jnp.sum(dpos * dpos, axis=1, keepdims=True)  # (tile_b, 1)
    dist_neg = jnp.sum(dneg * dneg, axis=1, keepdims=True)  # (tile_b, 1)

    losses = jnp.maximum(dist_pos - dist_neg + jnp.float32(margin), 0.0)

    if needs_mask:
        # Mask rows of the padded last tile; any garbage in the pad region
        # (including NaN/Inf) is discarded by the select below.
        i = pl.program_id(0)
        row = i * tile_b + jax.lax.broadcasted_iota(jnp.int32, (tile_b, 1), 0)
        losses = jnp.where(row < batch, losses, 0.0)

    partial = jnp.sum(losses)  # scalar partial sum for this batch tile
    # Lane-dense write (full 128-lane unmasked store); wrapper reads lane 0.
    o_ref[...] = jnp.full((1, _LANES), partial, dtype=jnp.float32)


def _pick_tile_b(B: int, D: int, itemsize: int) -> int:
    """~2 MiB per input tile, multiple of 8 sublanes, capped at the batch."""
    target_bytes = 2 * 1024 * 1024
    tb = target_bytes // max(D * itemsize, 1)
    tb = max(8, min(4096, (tb // 8) * 8))
    if tb >= B:
        return B  # single block: block dim == full array dim is always legal
    return tb


def triplet_loss(anchor: jax.Array,
                 positive: jax.Array,
                 negative: jax.Array,
                 margin: float = 1.0,
                 tile_b: int | None = None) -> jax.Array:
    """Pallas TPU implementation of TripletLoss.forward. Returns a scalar."""
    assert anchor.shape == positive.shape == negative.shape
    assert anchor.ndim == 2, "expected (B, D) embeddings"
    B, D = anchor.shape

    if tile_b is None:
        tile_b = _pick_tile_b(B, D, anchor.dtype.itemsize)
    if tile_b < B:
        assert tile_b % 8 == 0, "batch tile must be a multiple of 8 sublanes"
    else:
        tile_b = B
    num_tiles = pl.cdiv(B, tile_b)
    needs_mask = (B % tile_b) != 0
    # TODO(synk): for extremely large D a second "arbitrary" grid axis over the
    # feature dim (with a (TB, 1) partial-sum scratch) would bound VMEM further.

    kernel = functools.partial(
        _triplet_partial_kernel, margin=float(margin), batch=B,
        tile_b=tile_b, needs_mask=needs_mask)

    itemsize = anchor.dtype.itemsize
    cost = pl.CostEstimate(
        flops=int(6 * B * D + 4 * B),
        transcendentals=0,
        bytes_accessed=int(3 * B * D * itemsize + num_tiles * _LANES * 4),
    )

    partials = pl.pallas_call(
        kernel,
        out_shape=jax.ShapeDtypeStruct((num_tiles, _LANES), jnp.float32),
        grid=(num_tiles,),
        in_specs=[
            pl.BlockSpec((tile_b, D), lambda i: (i, 0)),
            pl.BlockSpec((tile_b, D), lambda i: (i, 0)),
            pl.BlockSpec((tile_b, D), lambda i: (i, 0)),
        ],
        out_specs=pl.BlockSpec((1, _LANES), lambda i: (i, 0)),
        compiler_params=pltpu.CompilerParams(
            dimension_semantics=("parallel",)),
        cost_estimate=cost,
    )(anchor, positive, negative)

    # Tiny final reduction + mean over the *true* batch size in plain XLA.
    return jnp.sum(partials[:, 0]) * jnp.float32(1.0 / B)


def _reference(anchor, positive, negative, margin=1.0):
    a = anchor.astype(jnp.float32)
    p = positive.astype(jnp.float32)
    n = negative.astype(jnp.float32)
    dp = jnp.sum((a - p) ** 2, axis=1)
    dn = jnp.sum((a - n) ** 2, axis=1)
    return jnp.mean(jnp.maximum(dp - dn + margin, 0.0))


if __name__ == "__main__":
    key = jax.random.PRNGKey(0)

    # Case 1: small embedding batch (single-tile path).
    k_a, k_p, k_n, key = jax.random.split(key, 4)
    B, D = 8, 32
    anchor = jax.random.normal(k_a, (B, D), dtype=jnp.float32)
    positive = jax.random.normal(k_p, (B, D), dtype=jnp.float32)
    negative = jax.random.normal(k_n, (B, D), dtype=jnp.float32)

    loss = triplet_loss(anchor, positive, negative, margin=1.0)
    jax.block_until_ready(loss)
    ref = _reference(anchor, positive, negative, margin=1.0)
    assert jnp.allclose(loss, ref, atol=1e-5, rtol=1e-5), (loss, ref)

    # Case 2: multi-tile path with a partial last tile (exercises masking).
    k_a, k_p, k_n, key = jax.random.split(key, 4)
    B2, D2 = 20, 32
    a2 = jax.random.normal(k_a, (B2, D2), dtype=jnp.float32)
    p2 = jax.random.normal(k_p, (B2, D2), dtype=jnp.float32)
    n2 = jax.random.normal(k_n, (B2, D2), dtype=jnp.float32)

    loss2 = triplet_loss(a2, p2, n2, margin=1.0, tile_b=8)  # 3 tiles, last partial
    jax.block_until_ready(loss2)
    ref2 = _reference(a2, p2, n2, margin=1.0)
    assert jnp.allclose(loss2, ref2, atol=1e-5, rtol=1e-5), (loss2, ref2)

    print("KERNEL_OK")
</pallas_src>

<mosaic_0001>
module attributes {stable_mosaic.version = 11 : i64} {
  func.func @_triplet_partial_kernel(%arg0: i32, %arg1: memref<8x32xf32, #tpu.memory_space<vmem>>, %arg2: memref<8x32xf32, #tpu.memory_space<vmem>>, %arg3: memref<8x32xf32, #tpu.memory_space<vmem>>, %arg4: memref<1x128xf32, #tpu.memory_space<vmem>>) attributes {dimension_semantics = [#tpu.dimension_semantics<parallel>], iteration_bounds = array<i64: 1>, scalar_prefetch = 0 : i64, scratch_operands = 0 : i64, tpu.core_type = #tpu.core_type<tc>, window_params = [{transform_indices = @transform_0, window_bounds = array<i64: 8, 32>}, {transform_indices = @transform_1, window_bounds = array<i64: 8, 32>}, {transform_indices = @transform_2, window_bounds = array<i64: 8, 32>}, {transform_indices = @transform_3, window_bounds = array<i64: 1, 128>}]} {
    %c0 = arith.constant 0 : index
    %c0_0 = arith.constant 0 : index
    %0 = vector.load %arg1[%c0, %c0_0] : memref<8x32xf32, #tpu.memory_space<vmem>>, vector<8x32xf32>
    %c0_1 = arith.constant 0 : index
    %c0_2 = arith.constant 0 : index
    %1 = vector.load %arg2[%c0_1, %c0_2] : memref<8x32xf32, #tpu.memory_space<vmem>>, vector<8x32xf32>
    %c0_3 = arith.constant 0 : index
    %c0_4 = arith.constant 0 : index
    %2 = vector.load %arg3[%c0_3, %c0_4] : memref<8x32xf32, #tpu.memory_space<vmem>>, vector<8x32xf32>
    %3 = arith.subf %0, %1 : vector<8x32xf32>
    %4 = arith.subf %0, %2 : vector<8x32xf32>
    %5 = arith.mulf %3, %3 : vector<8x32xf32>
    %cst = arith.constant dense<0.000000e+00> : vector<8xf32>
    %6 = vector.multi_reduction <add>, %5, %cst [1] : vector<8x32xf32> to vector<8xf32>
    %7 = vector.shape_cast %6 : vector<8xf32> to vector<8x1xf32>
    %8 = arith.mulf %4, %4 : vector<8x32xf32>
    %cst_5 = arith.constant dense<0.000000e+00> : vector<8xf32>
    %9 = vector.multi_reduction <add>, %8, %cst_5 [1] : vector<8x32xf32> to vector<8xf32>
    %10 = vector.shape_cast %9 : vector<8xf32> to vector<8x1xf32>
    %11 = arith.subf %7, %10 : vector<8x1xf32>
    %cst_6 = arith.constant 1.000000e+00 : f32
    %12 = vector.broadcast %cst_6 : f32 to vector<8x1xf32>
    %13 = arith.addf %11, %12 : vector<8x1xf32>
    %cst_7 = arith.constant 0.000000e+00 : f32
    %14 = vector.broadcast %cst_7 : f32 to vector<8x1xf32>
    %15 = arith.maximumf %13, %14 : vector<8x1xf32>
    %16 = vector.shape_cast %15 : vector<8x1xf32> to vector<1x8x1xf32>
    %cst_8 = arith.constant dense<0.000000e+00> : vector<1xf32>
    %17 = vector.multi_reduction <add>, %16, %cst_8 [1, 2] : vector<1x8x1xf32> to vector<1xf32>
    %18 = vector.shape_cast %17 : vector<1xf32> to vector<1x1x1xf32>
    %19 = vector.extract %18[0, 0, 0] : f32 from vector<1x1x1xf32>
    %20 = vector.broadcast %19 : f32 to vector<1x128xf32>
    %c0_9 = arith.constant 0 : index
    %c0_10 = arith.constant 0 : index
    %21 = vector.load %arg4[%c0_9, %c0_10] : memref<1x128xf32, #tpu.memory_space<vmem>>, vector<1x128xf32>
    tpu.vector_store %arg4[%c0_9, %c0_10], %20 {strides = array<i32>} : memref<1x128xf32, #tpu.memory_space<vmem>>, vector<1x128xf32>,
    return
  }
  func.func @transform_0(%arg0: i32) -> (i32, i32) {
    %c0_i32 = arith.constant 0 : i32
    %c0_i32_0 = arith.constant 0 : i32
    return %arg0, %c0_i32 : i32, i32
  }
  func.func @transform_1(%arg0: i32) -> (i32, i32) {
    %c0_i32 = arith.constant 0 : i32
    %c0_i32_0 = arith.constant 0 : i32
    return %arg0, %c0_i32 : i32, i32
  }
  func.func @transform_2(%arg0: i32) -> (i32, i32) {
    %c0_i32 = arith.constant 0 : i32
    %c0_i32_0 = arith.constant 0 : i32
    return %arg0, %c0_i32 : i32, i32
  }
  func.func @transform_3(%arg0: i32) -> (i32, i32) {
    %c0_i32 = arith.constant 0 : i32
    %c0_i32_0 = arith.constant 0 : i32
    return %arg0, %c0_i32 : i32, i32
  }
}

</mosaic_0001>

<llo_original>
// kernel: tpu_custom_call.1
$region0: #{tpu_custom_call.1}
  #allocation0 [shape = 'u32[]', space=smem, size = 0x4, offset = 0x4, fixed_abs, tag = 'smem constant byte address 0x4 - core index']
  #allocation1 [shape = 'u32[144,128]{1,0:T(1,128)}', space=vmem, size = 0x12000, scoped, tag = 'internal scratch']
  %s0 = inlined_call_operand.hbm [shape: f32[8,32], index: 0, kind: input, shape index: {}]
  %s1 = inlined_call_operand.hbm [shape: f32[8,32], index: 1, kind: input, shape index: {}]
  %s2 = inlined_call_operand.hbm [shape: f32[8,32], index: 2, kind: input, shape index: {}]
  %s3 = inlined_call_operand.hbm [shape: f32[1,128], index: 3, kind: output, shape index: {}]
  %s4 = sld [smem:[#allocation0]]
  $region34: #{tpu_custom_call.1} parent=0
    _
  %s6 = ssub.s32 1, %s4
  %s7 = scalar_select 0, %s6, %s4
  $region1: #{tpu_custom_call.1} parent=0
    #allocation2 [shape = 'u8[4096]{0}', space=vmem, size = 0x1000, scoped, tag = 'input window, operand 0, single buffered']
    #allocation3 [shape = 's32[1]{0}', space=sflag, size = 0x4, scoped, tag = 'scoped memory for tpu_custom_call.1']
    #allocation4 [shape = 's32[1]{0}', space=sflag, size = 0x4, scoped, tag = 'scoped memory for tpu_custom_call.1']
    #allocation5 [shape = 'u8[4096]{0}', space=vmem, size = 0x1000, scoped, tag = 'input window, operand 1, single buffered']
    #allocation6 [shape = 's32[1]{0}', space=sflag, size = 0x4, scoped, tag = 'scoped memory for tpu_custom_call.1']
    #allocation7 [shape = 'u8[4096]{0}', space=vmem, size = 0x1000, scoped, tag = 'input window, operand 2, single buffered']
    #allocation8 [shape = 'u8[512]{0}', space=vmem, size = 0x400, scoped, tag = 'output window, operand 0, single buffered']
    %8 = vsyncpa [#allocation3], 0
    %9 = vsyncpa [#allocation6], 0
    %10 = vsyncpa [#allocation4], 0
    // Predicated region
    $region2: #{tpu_custom_call.1} parent=1 // pred_check
      _
    $region3: #{tpu_custom_call.1} parent=1 // pred_check_branch
      %12 = sbr.rel (0) target = $region5
    $region4: #{tpu_custom_call.1} parent=1 // pred_region
      %s14 = ssub.s32 128, 128
      %15 = vsyncadd [#allocation3], %s14
      %s17 = sshll.u32 [#allocation2], 4
      %s18 = int_to_ptr.vmem [resolvable:$true] %s17
      %20 = dma.hbm_to_vmem [thread:$0]  %s0, 128, %s18, [#allocation3]
    $region5: #{tpu_custom_call.1} parent=1 // pred_fallthru
      _
    // Predicated region
    $region6: #{tpu_custom_call.1} parent=1 // pred_check
      _
    $region7: #{tpu_custom_call.1} parent=1 // pred_check_branch
      %22 = sbr.rel (0) target = $region9
    $region8: #{tpu_custom_call.1} parent=1 // pred_region
      %s24 = ssub.s32 128, 128
      %25 = vsyncadd [#allocation6], %s24
      %s27 = sshll.u32 [#allocation5], 4
      %s28 = int_to_ptr.vmem [resolvable:$true] %s27
      %30 = dma.hbm_to_vmem [thread:$0]  %s1, 128, %s28, [#allocation6]
    $region9: #{tpu_custom_call.1} parent=1 // pred_fallthru
      _
    // Predicated region
    $region10: #{tpu_custom_call.1} parent=1 // pred_check
      _
    $region11: #{tpu_custom_call.1} parent=1 // pred_check_branch
      %32 = sbr.rel (0) target = $region13
    $region12: #{tpu_custom_call.1} parent=1 // pred_region
      %s34 = ssub.s32 128, 128
      %35 = vsyncadd [#allocation6], %s34
      %s37 = sshll.u32 [#allocation7], 4
      %s38 = int_to_ptr.vmem [resolvable:$true] %s37
      %40 = dma.hbm_to_vmem [thread:$0]  %s2, 128, %s38, [#allocation6]
    $region13: #{tpu_custom_call.1} parent=1 // pred_fallthru
      _
    // Predicated region
    $region14: #{tpu_custom_call.1} parent=1 // pred_check
      _
    $region15: #{tpu_custom_call.1} parent=1 // pred_check_branch
      %42 = sbr.rel (0) target = $region17
    $region16: #{tpu_custom_call.1} parent=1 // pred_region
      %43 = dma.done [#allocation3], 128
    $region17: #{tpu_custom_call.1} parent=1 // pred_fallthru
      _
    // Predicated region
    $region18: #{tpu_custom_call.1} parent=1 // pred_check
      _
    $region19: #{tpu_custom_call.1} parent=1 // pred_check_branch
      %45 = sbr.rel (0) target = $region21
    $region20: #{tpu_custom_call.1} parent=1 // pred_region
      %46 = dma.done [#allocation6], 128
    $region21: #{tpu_custom_call.1} parent=1 // pred_fallthru
      _
    // Predicated region
    $region22: #{tpu_custom_call.1} parent=1 // pred_check
      _
    $region23: #{tpu_custom_call.1} parent=1 // pred_check_branch
      %48 = sbr.rel (0) target = $region25
    $region24: #{tpu_custom_call.1} parent=1 // pred_region
      %49 = dma.done [#allocation6], 128
    $region25: #{tpu_custom_call.1} parent=1 // pred_fallthru
      _
    %v50 = vld [vmem:[#allocation2] sm:$0xff]
    %v51 = vld [vmem:[#allocation5] sm:$0xff]
    %v52 = vld [vmem:[#allocation7] sm:$0xff]
    %v53 = vsub.f32 %v50, %v51
    %v54 = vsub.f32 %v50, %v52
    %v55 = vmul.f32 %v53, %v53
    %vm56 = vcmask 261120
    %v57 = vsel %vm56, %v55, 0.0
    %58 = vadd.xlane.f32.xlu0 %v57
    %v59 = vpop.xlane.xlu0 %58
    %v60 = vmul.f32 %v54, %v54
    %v61 = vsel %vm56, %v60, 0.0
    %62 = vadd.xlane.f32.xlu0 %v61
    %v63 = vpop.xlane.xlu0 %62
    %v64 = vsub.f32 %v59, %v63
    %v65 = vadd.f32 %v64, 1.0
    %v66 = vmax.f32 %v65, 0.0
    %vm67 = vcmask 7168
    %v68 = vsel %vm67, %v66, 0.0
    %69 = vadd.xlane.f32.xlu0 %v68
    %v70 = vpop.xlane.xlu0 %69
    %v71 = vrot.slane %v70, 4
    %v72 = vadd.f32 %v70, %v71
    %v73 = vrot.slane %v72, 2
    %v74 = vadd.f32 %v72, %v73
    %v75 = vrot.slane %v74, 1
    %v76 = vadd.f32 %v74, %v75
    %s77 = vtos %v76
    %v78 = vstv %s77
    %79 = vst [vmem:[#allocation8] sm:$0x1] %v78
    // Predicated region
    $region26: #{tpu_custom_call.1} parent=1 // pred_check
      _
    $region27: #{tpu_custom_call.1} parent=1 // pred_check_branch
      %81 = sbr.rel (0) target = $region29
    $region28: #{tpu_custom_call.1} parent=1 // pred_region
      %s83 = ssub.s32 16, 16
      %84 = vsyncadd [#allocation4], %s83
      %s86 = sshll.u32 [#allocation8], 4
      %s87 = int_to_ptr.vmem [resolvable:$true] %s86
      %89 = dma.vmem_to_hbm [thread:$0]  %s87, 16, %s3, [#allocation4]
    $region29: #{tpu_custom_call.1} parent=1 // pred_fallthru
      _
    // Predicated region
    $region30: #{tpu_custom_call.1} parent=1 // pred_check
      _
    $region31: #{tpu_custom_call.1} parent=1 // pred_check_branch
      %91 = sbr.rel (0) target = $region33
    $region32: #{tpu_custom_call.1} parent=1 // pred_region
      %92 = dma.done [#allocation4], 16
    $region33: #{tpu_custom_call.1} parent=1 // pred_fallthru
      _
    %93 = vsyncpa [#allocation3], 1
    %94 = vsyncpa [#allocation6], 1
    %95 = vsyncpa [#allocation4], 1

</llo_original>
